<compile_context>
chip_gen: v7x
topology: tpu7x:2x2x1
jax: 0.10.0
libtpu: 0.0.40
codegen_flags: <defaults>
</compile_context>

<pallas_src>
import functools

import jax
import jax.numpy as jnp
from jax.experimental import pallas as pl
from jax.experimental.pallas import tpu as pltpu


def _round_up(x: int, m: int) -> int:
    return ((x + m - 1) // m) * m


def _cdiv(a: int, b: int) -> int:
    return -(-a // b)


def _make_dice_partial_kernel(n_classes: int, tile_p: int, softmax: bool,
                              use_mask: bool):
    """Kernel computing per-class partial sums for one (batch, spatial-tile)."""

    def kernel(x_ref, t_ref, inter_ref, z_ref, y_ref):
        t_idx = pl.program_id(1)  # spatial tile index ("arbitrary" axis)

        # Zero the resident per-batch accumulators on the first spatial tile.
        @pl.when(t_idx == 0)
        def _():
            inter_ref[...] = jnp.zeros_like(inter_ref)
            z_ref[...] = jnp.zeros_like(z_ref)
            y_ref[...] = jnp.zeros_like(y_ref)

        x = x_ref[...].astype(jnp.float32)   # (C, TILE_P)
        tgt = t_ref[...]                     # (1, TILE_P) int32 (-1 = padding)

        if softmax:
            # Numerically-stable softmax over the class (sublane) axis,
            # no per-class temporaries materialized.
            m = jnp.max(x, axis=0, keepdims=True)          # (1, TILE_P)  XLU
            e = jnp.exp(x - m)                             # (C, TILE_P)  EUP
            denom = jnp.sum(e, axis=0, keepdims=True)      # (1, TILE_P)  XLU
            s = e * pl.reciprocal(denom, approx=True)      # (C, TILE_P)  EUP
        else:
            s = x

        # One-hot via broadcast compare against the class iota.
        cls = jax.lax.broadcasted_iota(jnp.int32, (n_classes, tile_p), 0)
        onehot = tgt == cls                                # (C, TILE_P) bool

        if use_mask:
            # Padded spatial columns carry target == -1: the one-hot compare
            # is already False there, only the score needs zeroing.
            s = jnp.where(tgt >= 0, s, 0.0)

        # Three lane reductions per tile (independent of n_classes).
        inter_ref[...] += jnp.sum(jnp.where(onehot, s, 0.0), axis=1,
                                  keepdims=True)           # (C, 1)
        z_ref[...] += jnp.sum(s * s, axis=1, keepdims=True)
        y_ref[...] += jnp.sum(onehot.astype(jnp.float32), axis=1,
                              keepdims=True)

    return kernel


@functools.partial(jax.jit, static_argnames=("softmax", "tile_p"))
def dice_loss(inputs, target, weight=None, softmax=False, tile_p=None):
    """Pallas DiceLoss forward.

    inputs: (B, C, H, W) float32/bfloat16 scores or probabilities
    target: (B, H, W)    integer class labels in [0, C)
    weight: (C,)         per-class weights (None -> ones, like the module)
    tile_p: spatial tile override (None -> auto, VMEM/overhead aware)
    """
    B, C, H, W = inputs.shape
    assert target.shape == (B, H, W), "predict & target shape do not match"
    HW = H * W

    # Lane-dense layout (free reshape, no transpose).
    x3 = inputs.reshape(B, C, HW)
    t3 = target.astype(jnp.int32).reshape(B, 1, HW)

    # ---- spatial tile selection --------------------------------------------
    itemsize = jnp.dtype(x3.dtype).itemsize
    if tile_p is None:
        # Largest tile (multiple of 128) moving ~6 MiB of inputs+target per
        # grid step: amortizes per-step overhead, double-buffered working set
        # stays ~12 MiB (well under the 32 MiB scoped-VMEM limit below).
        cap_bytes = 6 * 1024 * 1024
        per_col_bytes = C * itemsize + 4          # x columns + int32 target
        cap = max(128, (cap_bytes // per_col_bytes) // 128 * 128)
    else:
        cap = max(128, _round_up(int(tile_p), 128))

    # Balance tiles so padding (if any) stays below 128 columns per tile.
    num_tiles = max(1, _cdiv(_round_up(HW, 128), cap))
    tile = int(min(cap, _round_up(_cdiv(HW, num_tiles), 128)))
    hw_pad = num_tiles * tile

    needs_mask = hw_pad != HW
    if needs_mask:
        # TODO(synk): ragged spatial sizes take a one-off pad copy; in-kernel
        # index masking of the boundary block would avoid the extra HBM pass.
        x3 = jnp.pad(x3, ((0, 0), (0, 0), (0, hw_pad - HW)))
        t3 = jnp.pad(t3, ((0, 0), (0, 0), (0, hw_pad - HW)), constant_values=-1)

    kernel = _make_dice_partial_kernel(C, tile, bool(softmax), needs_mask)

    part_shape = jax.ShapeDtypeStruct((B, C, 1), jnp.float32)
    o_inter, o_z, o_y = pl.pallas_call(
        kernel,
        out_shape=(part_shape, part_shape, part_shape),
        grid_spec=pltpu.PrefetchScalarGridSpec(
            num_scalar_prefetch=0,
            grid=(B, num_tiles),
            in_specs=[
                pl.BlockSpec((None, C, tile), lambda b, t: (b, 0, t)),
                pl.BlockSpec((None, 1, tile), lambda b, t: (b, 0, t)),
            ],
            out_specs=(
                pl.BlockSpec((None, C, 1), lambda b, t: (b, 0, 0)),
                pl.BlockSpec((None, C, 1), lambda b, t: (b, 0, 0)),
                pl.BlockSpec((None, C, 1), lambda b, t: (b, 0, 0)),
            ),
        ),
        compiler_params=pltpu.CompilerParams(
            dimension_semantics=("parallel", "arbitrary"),
            vmem_limit_bytes=32 * 1024 * 1024,
        ),
    )(x3, t3)

    if weight is None:
        weight = jnp.ones((C,), jnp.float32)
    weight = jnp.asarray(weight, jnp.float32)

    # Tiny finalize in JAX: combine per-batch partials, compute dice + loss.
    intersect = jnp.sum(o_inter[..., 0], axis=0)   # (C,)
    z_sum = jnp.sum(o_z[..., 0], axis=0)           # (C,)
    y_sum = jnp.sum(o_y[..., 0], axis=0)           # (C,)
    smooth = jnp.float32(1e-5)
    dice = (2.0 * intersect + smooth) / (z_sum + y_sum + smooth)
    return jnp.sum((1.0 - dice) * weight) / C


def dice_loss_ref(inputs, target, weight, softmax=False):
    """Pure-JAX reference mirroring the PyTorch module."""
    n_classes = inputs.shape[1]
    x = inputs.astype(jnp.float32)
    if softmax:
        x = jax.nn.softmax(x, axis=1)
    one_hot = jnp.stack(
        [(target == i).astype(jnp.float32) for i in range(n_classes)], axis=1)
    smooth = 1e-5
    loss = 0.0
    for i in range(n_classes):
        s = x[:, i]
        t = one_hot[:, i]
        intersect = jnp.sum(s * t)
        y_sum = jnp.sum(t * t)
        z_sum = jnp.sum(s * s)
        dice = (2.0 * intersect + smooth) / (z_sum + y_sum + smooth)
        loss = loss + (1.0 - dice) * weight[i]
    return loss / n_classes


if __name__ == "__main__":
    B, C, H, W = 2, 4, 16, 16
    key = jax.random.PRNGKey(0)
    k_in, k_tgt = jax.random.split(key)

    inputs = jax.random.normal(k_in, (B, C, H, W), dtype=jnp.float32)
    target = jax.random.randint(k_tgt, (B, H, W), 0, C, dtype=jnp.int32)
    # weight=None in the module -> [1] * n_classes
    weight = jnp.ones((C,), dtype=jnp.float32)

    # 1) softmax=True, small tile -> grid (2, 2): exercises the pl.when init
    #    + multi-tile accumulate path.
    out = jax.block_until_ready(
        dice_loss(inputs, target, weight, softmax=True, tile_p=128))
    ref = dice_loss_ref(inputs, target, weight, softmax=True)
    assert jnp.allclose(out, ref, rtol=2e-3, atol=1e-4), (out, ref)

    # 2) softmax=False path (module default).
    out2 = jax.block_until_ready(
        dice_loss(inputs, target, weight, softmax=False, tile_p=128))
    ref2 = dice_loss_ref(inputs, target, weight, softmax=False)
    assert jnp.allclose(out2, ref2, rtol=1e-5, atol=1e-5), (out2, ref2)

    # 3) auto tile (single spatial tile per batch element, pad-free fast path).
    out3 = jax.block_until_ready(dice_loss(inputs, target, weight, softmax=True))
    assert jnp.allclose(out3, ref, rtol=2e-3, atol=1e-4), (out3, ref)

    # 4) ragged spatial size (13x13) -> pad + sentinel-mask path.
    H2 = W2 = 13
    inp2 = jax.random.normal(k_in, (B, C, H2, W2), dtype=jnp.float32)
    tgt2 = jax.random.randint(k_tgt, (B, H2, W2), 0, C, dtype=jnp.int32)
    out4 = jax.block_until_ready(
        dice_loss(inp2, tgt2, weight, softmax=True, tile_p=128))
    ref4 = dice_loss_ref(inp2, tgt2, weight, softmax=True)
    assert jnp.allclose(out4, ref4, rtol=2e-3, atol=1e-4), (out4, ref4)

    # 5) bf16 logits: DMA at half the bytes, upcast in-kernel.
    inp_bf16 = inputs.astype(jnp.bfloat16)
    out5 = jax.block_until_ready(
        dice_loss(inp_bf16, target, weight, softmax=True, tile_p=128))
    ref5 = dice_loss_ref(inp_bf16, target, weight, softmax=True)
    assert jnp.allclose(out5, ref5, rtol=5e-3, atol=1e-4), (out5, ref5)

    print("KERNEL_OK")
</pallas_src>

<mosaic_0001>
module attributes {stable_mosaic.version = 11 : i64} {
  func.func @kernel(%arg0: i32, %arg1: i32, %arg2: memref<1x4x128xf32, #tpu.memory_space<vmem>>, %arg3: memref<1x1x128xi32, #tpu.memory_space<vmem>>, %arg4: memref<1x4x1xf32, #tpu.memory_space<vmem>>, %arg5: memref<1x4x1xf32, #tpu.memory_space<vmem>>, %arg6: memref<1x4x1xf32, #tpu.memory_space<vmem>>) attributes {dimension_semantics = [#tpu.dimension_semantics<parallel>, #tpu.dimension_semantics<arbitrary>], iteration_bounds = array<i64: 2, 2>, scalar_prefetch = 0 : i64, scratch_operands = 0 : i64, tpu.core_type = #tpu.core_type<tc>, window_params = [{transform_indices = @transform_0, window_bounds = array<i64: 1, 4, 128>}, {transform_indices = @transform_1, window_bounds = array<i64: 1, 1, 128>}, {transform_indices = @transform_2, window_bounds = array<i64: 1, 4, 1>}, {transform_indices = @transform_3, window_bounds = array<i64: 1, 4, 1>}, {transform_indices = @transform_4, window_bounds = array<i64: 1, 4, 1>}]} {
    %c0_i32 = arith.constant 0 : i32
    %0 = arith.cmpi eq, %arg1, %c0_i32 : i32
    %1 = arith.extui %0 : i1 to i32
    %c0_i32_0 = arith.constant 0 : i32
    %2 = arith.cmpi ne, %1, %c0_i32_0 : i32
    scf.if %2 {
      %cst_29 = arith.constant 0.000000e+00 : f32
      %49 = vector.broadcast %cst_29 : f32 to vector<4x1xf32>
      %c0_30 = arith.constant 0 : index
      %c0_31 = arith.constant 0 : index
      %c0_32 = arith.constant 0 : index
      %50 = vector.load %arg4[%c0_30, %c0_31, %c0_32] : memref<1x4x1xf32, #tpu.memory_space<vmem>>, vector<1x4x1xf32>
      %51 = vector.shape_cast %50 : vector<1x4x1xf32> to vector<4x1xf32>
      %52 = vector.shape_cast %49 : vector<4x1xf32> to vector<1x4x1xf32>
      tpu.vector_store %arg4[%c0_30, %c0_31, %c0_32], %52 {strides = array<i32>} : memref<1x4x1xf32, #tpu.memory_space<vmem>>, vector<1x4x1xf32>,
      %cst_33 = arith.constant 0.000000e+00 : f32
      %53 = vector.broadcast %cst_33 : f32 to vector<4x1xf32>
      %c0_34 = arith.constant 0 : index
      %c0_35 = arith.constant 0 : index
      %c0_36 = arith.constant 0 : index
      %54 = vector.load %arg5[%c0_34, %c0_35, %c0_36] : memref<1x4x1xf32, #tpu.memory_space<vmem>>, vector<1x4x1xf32>
      %55 = vector.shape_cast %54 : vector<1x4x1xf32> to vector<4x1xf32>
      %56 = vector.shape_cast %53 : vector<4x1xf32> to vector<1x4x1xf32>
      tpu.vector_store %arg5[%c0_34, %c0_35, %c0_36], %56 {strides = array<i32>} : memref<1x4x1xf32, #tpu.memory_space<vmem>>, vector<1x4x1xf32>,
      %cst_37 = arith.constant 0.000000e+00 : f32
      %57 = vector.broadcast %cst_37 : f32 to vector<4x1xf32>
      %c0_38 = arith.constant 0 : index
      %c0_39 = arith.constant 0 : index
      %c0_40 = arith.constant 0 : index
      %58 = vector.load %arg6[%c0_38, %c0_39, %c0_40] : memref<1x4x1xf32, #tpu.memory_space<vmem>>, vector<1x4x1xf32>
      %59 = vector.shape_cast %58 : vector<1x4x1xf32> to vector<4x1xf32>
      %60 = vector.shape_cast %57 : vector<4x1xf32> to vector<1x4x1xf32>
      tpu.vector_store %arg6[%c0_38, %c0_39, %c0_40], %60 {strides = array<i32>} : memref<1x4x1xf32, #tpu.memory_space<vmem>>, vector<1x4x1xf32>,
    } else {
    }
    %c0 = arith.constant 0 : index
    %c0_1 = arith.constant 0 : index
    %c0_2 = arith.constant 0 : index
    %3 = vector.load %arg2[%c0, %c0_1, %c0_2] : memref<1x4x128xf32, #tpu.memory_space<vmem>>, vector<1x4x128xf32>
    %4 = vector.shape_cast %3 : vector<1x4x128xf32> to vector<4x128xf32>
    %c0_3 = arith.constant 0 : index
    %c0_4 = arith.constant 0 : index
    %c0_5 = arith.constant 0 : index
    %5 = vector.load %arg3[%c0_3, %c0_4, %c0_5] : memref<1x1x128xi32, #tpu.memory_space<vmem>>, vector<1x1x128xi32>
    %6 = vector.shape_cast %5 : vector<1x1x128xi32> to vector<1x128xi32>
    %cst = arith.constant dense<0xFF800000> : vector<128xf32>
    %7 = vector.multi_reduction <maximumf>, %4, %cst [0] : vector<4x128xf32> to vector<128xf32>
    %8 = vector.shape_cast %7 : vector<128xf32> to vector<1x128xf32>
    %9 = vector.broadcast %8 : vector<1x128xf32> to vector<4x128xf32>
    %10 = arith.subf %4, %9 : vector<4x128xf32>
    %11 = math.exp %10 : vector<4x128xf32>
    %cst_6 = arith.constant dense<0.000000e+00> : vector<128xf32>
    %12 = vector.multi_reduction <add>, %11, %cst_6 [0] : vector<4x128xf32> to vector<128xf32>
    %13 = vector.shape_cast %12 : vector<128xf32> to vector<1x128xf32>
    %14 = tpu.reciprocal %13 {approx = true} : vector<1x128xf32> -> vector<1x128xf32>
    %15 = vector.broadcast %14 : vector<1x128xf32> to vector<4x128xf32>
    %16 = arith.mulf %11, %15 : vector<4x128xf32>
    %17 = tpu.iota {dimensions = array<i32: 0>} : vector<4x128xi32>
    %18 = vector.broadcast %6 : vector<1x128xi32> to vector<4x128xi32>
    %19 = arith.cmpi eq, %18, %17 : vector<4x128xi32>
    %c0_7 = arith.constant 0 : index
    %c0_8 = arith.constant 0 : index
    %c0_9 = arith.constant 0 : index
    %20 = vector.load %arg4[%c0_7, %c0_8, %c0_9] : memref<1x4x1xf32, #tpu.memory_space<vmem>>, vector<1x4x1xf32>
    %21 = vector.shape_cast %20 : vector<1x4x1xf32> to vector<4x1xf32>
    %cst_10 = arith.constant 0.000000e+00 : f32
    %22 = vector.broadcast %cst_10 : f32 to vector<4x128xf32>
    %23 = arith.select %19, %16, %22 : vector<4x128xi1>, vector<4x128xf32>
    %cst_11 = arith.constant dense<0.000000e+00> : vector<4xf32>
    %24 = vector.multi_reduction <add>, %23, %cst_11 [1] : vector<4x128xf32> to vector<4xf32>
    %25 = vector.shape_cast %24 : vector<4xf32> to vector<4x1xf32>
    %26 = arith.addf %21, %25 : vector<4x1xf32>
    %c0_12 = arith.constant 0 : index
    %c0_13 = arith.constant 0 : index
    %c0_14 = arith.constant 0 : index
    %27 = vector.load %arg4[%c0_12, %c0_13, %c0_14] : memref<1x4x1xf32, #tpu.memory_space<vmem>>, vector<1x4x1xf32>
    %28 = vector.shape_cast %27 : vector<1x4x1xf32> to vector<4x1xf32>
    %29 = vector.shape_cast %26 : vector<4x1xf32> to vector<1x4x1xf32>
    tpu.vector_store %arg4[%c0_12, %c0_13, %c0_14], %29 {strides = array<i32>} : memref<1x4x1xf32, #tpu.memory_space<vmem>>, vector<1x4x1xf32>,
    %c0_15 = arith.constant 0 : index
    %c0_16 = arith.constant 0 : index
    %c0_17 = arith.constant 0 : index
    %30 = vector.load %arg5[%c0_15, %c0_16, %c0_17] : memref<1x4x1xf32, #tpu.memory_space<vmem>>, vector<1x4x1xf32>
    %31 = vector.shape_cast %30 : vector<1x4x1xf32> to vector<4x1xf32>
    %32 = arith.mulf %16, %16 : vector<4x128xf32>
    %cst_18 = arith.constant dense<0.000000e+00> : vector<4xf32>
    %33 = vector.multi_reduction <add>, %32, %cst_18 [1] : vector<4x128xf32> to vector<4xf32>
    %34 = vector.shape_cast %33 : vector<4xf32> to vector<4x1xf32>
    %35 = arith.addf %31, %34 : vector<4x1xf32>
    %c0_19 = arith.constant 0 : index
    %c0_20 = arith.constant 0 : index
    %c0_21 = arith.constant 0 : index
    %36 = vector.load %arg5[%c0_19, %c0_20, %c0_21] : memref<1x4x1xf32, #tpu.memory_space<vmem>>, vector<1x4x1xf32>
    %37 = vector.shape_cast %36 : vector<1x4x1xf32> to vector<4x1xf32>
    %38 = vector.shape_cast %35 : vector<4x1xf32> to vector<1x4x1xf32>
    tpu.vector_store %arg5[%c0_19, %c0_20, %c0_21], %38 {strides = array<i32>} : memref<1x4x1xf32, #tpu.memory_space<vmem>>, vector<1x4x1xf32>,
    %c0_22 = arith.constant 0 : index
    %c0_23 = arith.constant 0 : index
    %c0_24 = arith.constant 0 : index
    %39 = vector.load %arg6[%c0_22, %c0_23, %c0_24] : memref<1x4x1xf32, #tpu.memory_space<vmem>>, vector<1x4x1xf32>
    %40 = vector.shape_cast %39 : vector<1x4x1xf32> to vector<4x1xf32>
    %41 = arith.extui %19 : vector<4x128xi1> to vector<4x128xi32>
    %42 = arith.sitofp %41 : vector<4x128xi32> to vector<4x128xf32>
    %cst_25 = arith.constant dense<0.000000e+00> : vector<4xf32>
    %43 = vector.multi_reduction <add>, %42, %cst_25 [1] : vector<4x128xf32> to vector<4xf32>
    %44 = vector.shape_cast %43 : vector<4xf32> to vector<4x1xf32>
    %45 = arith.addf %40, %44 : vector<4x1xf32>
    %c0_26 = arith.constant 0 : index
    %c0_27 = arith.constant 0 : index
    %c0_28 = arith.constant 0 : index
    %46 = vector.load %arg6[%c0_26, %c0_27, %c0_28] : memref<1x4x1xf32, #tpu.memory_space<vmem>>, vector<1x4x1xf32>
    %47 = vector.shape_cast %46 : vector<1x4x1xf32> to vector<4x1xf32>
    %48 = vector.shape_cast %45 : vector<4x1xf32> to vector<1x4x1xf32>
    tpu.vector_store %arg6[%c0_26, %c0_27, %c0_28], %48 {strides = array<i32>} : memref<1x4x1xf32, #tpu.memory_space<vmem>>, vector<1x4x1xf32>,
    return
  }
  func.func @transform_0(%arg0: i32, %arg1: i32) -> (i32, i32, i32) {
    %c0_i32 = arith.constant 0 : i32
    %c0_i32_0 = arith.constant 0 : i32
    return %arg0, %c0_i32, %arg1 : i32, i32, i32
  }
  func.func @transform_1(%arg0: i32, %arg1: i32) -> (i32, i32, i32) {
    %c0_i32 = arith.constant 0 : i32
    %c0_i32_0 = arith.constant 0 : i32
    return %arg0, %c0_i32, %arg1 : i32, i32, i32
  }
  func.func @transform_2(%arg0: i32, %arg1: i32) -> (i32, i32, i32) {
    %c0_i32 = arith.constant 0 : i32
    %c0_i32_0 = arith.constant 0 : i32
    %c0_i32_1 = arith.constant 0 : i32
    return %arg0, %c0_i32, %c0_i32_0 : i32, i32, i32
  }
  func.func @transform_3(%arg0: i32, %arg1: i32) -> (i32, i32, i32) {
    %c0_i32 = arith.constant 0 : i32
    %c0_i32_0 = arith.constant 0 : i32
    %c0_i32_1 = arith.constant 0 : i32
    return %arg0, %c0_i32, %c0_i32_0 : i32, i32, i32
  }
  func.func @transform_4(%arg0: i32, %arg1: i32) -> (i32, i32, i32) {
    %c0_i32 = arith.constant 0 : i32
    %c0_i32_0 = arith.constant 0 : i32
    %c0_i32_1 = arith.constant 0 : i32
    return %arg0, %c0_i32, %c0_i32_0 : i32, i32, i32
  }
}

</mosaic_0001>

<llo_original>
// kernel: dice_loss.1
$region0: #{dice_loss.1}
  #allocation0 [shape = 'u32[]', space=smem, size = 0x4, offset = 0x4, fixed_abs, tag = 'smem constant byte address 0x4 - core index']
  #allocation1 [shape = 'u32[144,128]{1,0:T(1,128)}', space=vmem, size = 0x12000, scoped, tag = 'internal scratch']
  %s0 = inlined_call_operand.vmem [shape: f32[2,4,256], index: 0, kind: input, shape index: {}]
  %s1 = inlined_call_operand.vmem [shape: s32[2,1,256], index: 1, kind: input, shape index: {}]
  %s2 = inlined_call_operand.vmem [shape: f32[2,4,1], index: 2, kind: output, shape index: {0}]
  %s3 = inlined_call_operand.vmem [shape: f32[2,4,1], index: 3, kind: output, shape index: {1}]
  %s4 = inlined_call_operand.vmem [shape: f32[2,4,1], index: 4, kind: output, shape index: {2}]
  %5 = xla_tuple %s2, %s3, %s4
  %s6 = sld [smem:[#allocation0]]
  $region61: #{dice_loss.1} parent=0
    _
  %s8 = ssub.s32 1, %s6
  %s9 = scalar_select 0, %s8, %s6
  loop: start=0, step=1, limit=6
  $region2: #{dice_loss.1} parent=0 // loop_pre_header
    _
  $region3: #{dice_loss.1} parent=0 // loop_header
    %s11 = sphi 0, %s15
    %p12 = scmp.ge.s32.totalorder %s11, 6
    %s18 = sphi 0, %s30
    %s19 = sphi 0, %s26
    %s20 = sphi 0, %s18
    %s21 = sphi 0, %s19
    %s22 = sphi 0, %s20
    %s23 = sphi 0, %s21
    %s35 = sphi 0, %s37
    %s38 = sphi 0, %s35
    %s39 = sphi 0, %s38
    %s55 = sphi 0, %s39
    %s63 = sphi 0, %s65
    %s66 = sphi 0, %s63
    %s67 = sphi 0, %s66
    %s83 = sphi 0, %s67
    %s89 = sphi 0, %s91
    %s92 = sphi 0, %s89
    %s93 = sphi 0, %s92
    %s109 = sphi 0, %s93
    %s115 = sphi 0, %s117
    %s118 = sphi 0, %s115
    %s119 = sphi 0, %s118
    %s135 = sphi 0, %s119
    %s141 = sphi 0, %s143
    %s144 = sphi 0, %s141
    %s145 = sphi 0, %s144
    %s161 = sphi 0, %s145
  $region4: #{dice_loss.1} parent=0 // loop_header_branch
    %14 = sbr.rel (%p12) target = $region8
  $region5: #{dice_loss.1} parent=0 // loop_body
    %s16 = ssub.s32 %s11, 1
    %s17 = ssub.s32 %s11, 2
    %s24 = sadd.s32 1, %s19
    %p25 = scmp.ge.s32.totalorder %s24, 2
    %s26 = scalar_select %p25, 0, %s24
    %s27 = sadd.s32 1, %s18
    %s28 = scalar_select %p25, %s27, %s18
    %p29 = scmp.ge.s32.totalorder %s28, 2
    %s30 = scalar_select %p29, 0, %s28
    %s31 = ssub.s32 %s18, %s30
    %s32 = ssub.s32 %s19, %s26
    %s33 = sor.u32 %s31, %s32
    %p34 = scmp.eq.s32.totalorder %s33, 0
    %s36 = sadd.s32 %s35, 1
    %s37 = scalar_select %p34, %s35, %s36
    %p40 = pneg %p34
    %p41 = scmp.eq.s32.totalorder %s11, 3
    %p42 = por %p40, %p41
    %p43 = scmp.ne.s32.totalorder %s35, %s38
    %p44 = scmp.eq.s32.totalorder %s11, 0
    %p45 = por %p43, %p44
    %p46 = scmp.ne.s32.totalorder %s35, %s38
    %p47 = scmp.eq.s32.totalorder %s16, 3
    %p48 = por %p46, %p47
    %p49 = scmp.ne.s32.totalorder %s38, %s39
    %p50 = scmp.eq.s32.totalorder %s16, 0
    %p51 = por %p49, %p50
    %p52 = scmp.ne.s32.totalorder %s38, %s39
    %p53 = scmp.eq.s32.totalorder %s17, 3
    %p54 = por %p52, %p53
    %p56 = scmp.ne.s32.totalorder %s39, %s55
    %p57 = scmp.eq.s32.totalorder %s17, 0
    %p58 = por %p56, %p57
    %s59 = ssub.s32 %s18, %s30
    %s60 = ssub.s32 %s19, %s26
    %s61 = sor.u32 %s59, %s60
    %p62 = scmp.eq.s32.totalorder %s61, 0
    %s64 = sadd.s32 %s63, 1
    %s65 = scalar_select %p62, %s63, %s64
    %p68 = pneg %p62
    %p69 = scmp.eq.s32.totalorder %s11, 3
    %p70 = por %p68, %p69
    %p71 = scmp.ne.s32.totalorder %s63, %s66
    %p72 = scmp.eq.s32.totalorder %s11, 0
    %p73 = por %p71, %p72
    %p74 = scmp.ne.s32.totalorder %s63, %s66
    %p75 = scmp.eq.s32.totalorder %s16, 3
    %p76 = por %p74, %p75
    %p77 = scmp.ne.s32.totalorder %s66, %s67
    %p78 = scmp.eq.s32.totalorder %s16, 0
    %p79 = por %p77, %p78
    %p80 = scmp.ne.s32.totalorder %s66, %s67
    %p81 = scmp.eq.s32.totalorder %s17, 3
    %p82 = por %p80, %p81
    %p84 = scmp.ne.s32.totalorder %s67, %s83
    %p85 = scmp.eq.s32.totalorder %s17, 0
    %p86 = por %p84, %p85
    %s87 = ssub.s32 %s18, %s30
    %p88 = scmp.eq.s32.totalorder %s87, 0
    %s90 = sadd.s32 %s89, 1
    %s91 = scalar_select %p88, %s89, %s90
    %p94 = pneg %p88
    %p95 = scmp.eq.s32.totalorder %s11, 3
    %p96 = por %p94, %p95
    %p97 = scmp.ne.s32.totalorder %s89, %s92
    %p98 = scmp.eq.s32.totalorder %s11, 0
    %p99 = por %p97, %p98
    %p100 = scmp.ne.s32.totalorder %s89, %s92
    %p101 = scmp.eq.s32.totalorder %s16, 3
    %p102 = por %p100, %p101
    %p103 = scmp.ne.s32.totalorder %s92, %s93
    %p104 = scmp.eq.s32.totalorder %s16, 0
    %p105 = por %p103, %p104
    %p106 = scmp.ne.s32.totalorder %s92, %s93
    %p107 = scmp.eq.s32.totalorder %s17, 3
    %p108 = por %p106, %p107
    %p110 = scmp.ne.s32.totalorder %s93, %s109
    %p111 = scmp.eq.s32.totalorder %s17, 0
    %p112 = por %p110, %p111
    %s113 = ssub.s32 %s18, %s30
    %p114 = scmp.eq.s32.totalorder %s113, 0
    %s116 = sadd.s32 %s115, 1
    %s117 = scalar_select %p114, %s115, %s116
    %p120 = pneg %p114
    %p121 = scmp.eq.s32.totalorder %s11, 3
    %p122 = por %p120, %p121
    %p123 = scmp.ne.s32.totalorder %s115, %s118
    %p124 = scmp.eq.s32.totalorder %s11, 0
    %p125 = por %p123, %p124
    %p126 = scmp.ne.s32.totalorder %s115, %s118
    %p127 = scmp.eq.s32.totalorder %s16, 3
    %p128 = por %p126, %p127
    %p129 = scmp.ne.s32.totalorder %s118, %s119
    %p130 = scmp.eq.s32.totalorder %s16, 0
    %p131 = por %p129, %p130
    %p132 = scmp.ne.s32.totalorder %s118, %s119
    %p133 = scmp.eq.s32.totalorder %s17, 3
    %p134 = por %p132, %p133
    %p136 = scmp.ne.s32.totalorder %s119, %s135
    %p137 = scmp.eq.s32.totalorder %s17, 0
    %p138 = por %p136, %p137
    %s139 = ssub.s32 %s18, %s30
    %p140 = scmp.eq.s32.totalorder %s139, 0
    %s142 = sadd.s32 %s141, 1
    %s143 = scalar_select %p140, %s141, %s142
    %p146 = pneg %p140
    %p147 = scmp.eq.s32.totalorder %s11, 3
    %p148 = por %p146, %p147
    %p149 = scmp.ne.s32.totalorder %s141, %s144
    %p150 = scmp.eq.s32.totalorder %s11, 0
    %p151 = por %p149, %p150
    %p152 = scmp.ne.s32.totalorder %s141, %s144
    %p153 = scmp.eq.s32.totalorder %s16, 3
    %p154 = por %p152, %p153
    %p155 = scmp.ne.s32.totalorder %s144, %s145
    %p156 = scmp.eq.s32.totalorder %s16, 0
    %p157 = por %p155, %p156
    %p158 = scmp.ne.s32.totalorder %s144, %s145
    %p159 = scmp.eq.s32.totalorder %s17, 3
    %p160 = por %p158, %p159
    %p162 = scmp.ne.s32.totalorder %s145, %s161
    %p163 = scmp.eq.s32.totalorder %s17, 0
    %p164 = por %p162, %p163
    %p165 = scmp.le.s32.totalorder 1, %s11
    %p166 = scmp.lt.s32.totalorder %s11, 5
    %p167 = pnand %p165, %p166
    %p168 = pneg %p167
    // Predicated region
    $region9: #{dice_loss.1} parent=5 // pred_check
      _
    $region10: #{dice_loss.1} parent=5 // pred_check_branch
      %170 = sbr.rel (%p167) target = $region12
    $region11: #{dice_loss.1} parent=5 // pred_region
      %s171 = ssub.s32 %s11, 1
    $region12: #{dice_loss.1} parent=5 // pred_fallthru
      _
    %p172 = scmp.lt.s32.totalorder %s11, 4
    // Predicated region
    $region13: #{dice_loss.1} parent=5 // pred_check
      %p173 = pneg %p172
    $region14: #{dice_loss.1} parent=5 // pred_check_branch
      %175 = sbr.rel (%p173) target = $region16
    $region15: #{dice_loss.1} parent=5 // pred_region
      // Predicated region
      $region17: #{dice_loss.1} parent=15 // pred_check
        %p176 = pneg %p45
      $region18: #{dice_loss.1} parent=15 // pred_check_branch
        %178 = sbr.rel (%p176) target = $region20
      $region19: #{dice_loss.1} parent=15 // pred_region
        %p179 = scmp.lt.s32.totalorder %s18, 1
        %s180 = scalar_select %p179, %s18, 1
        %p181 = scmp.lt.s32.totalorder %s19, 1
        %s182 = scalar_select %p181, %s19, 1
        %s183 = smul.addr %s180, 2
        %s184 = sadd.s32 %s182, %s183
        %s185 = smul.addr %s184, 4
        %s186 = scalar_lea.vmem %s0, %s185
      $region20: #{dice_loss.1} parent=15 // pred_fallthru
        _
      // Predicated region
      $region21: #{dice_loss.1} parent=15 // pred_check
        %p187 = pneg %p73
      $region22: #{dice_loss.1} parent=15 // pred_check_branch
        %189 = sbr.rel (%p187) target = $region24
      $region23: #{dice_loss.1} parent=15 // pred_region
        %p190 = scmp.lt.s32.totalorder %s18, 1
        %s191 = scalar_select %p190, %s18, 1
        %p192 = scmp.lt.s32.totalorder %s19, 1
        %s193 = scalar_select %p192, %s19, 1
        %s194 = smul.addr %s191, 2
        %s195 = sadd.s32 %s193, %s194
        %s196 = scalar_lea.vmem %s1, %s195
      $region24: #{dice_loss.1} parent=15 // pred_fallthru
        _
    $region16: #{dice_loss.1} parent=5 // pred_fallthru
      _
    %p197 = scmp.le.s32.totalorder 1, %s11
    %p198 = scmp.lt.s32.totalorder %s11, 5
    %p199 = pnand %p197, %p198
    %p200 = pneg %p199
    // Predicated region
    $region25: #{dice_loss.1} parent=5 // pred_check
      _
    $region26: #{dice_loss.1} parent=5 // pred_check_branch
      %202 = sbr.rel (%p199) target = $region28
    $region27: #{dice_loss.1} parent=5 // pred_region
      %s203 = ssub.s32 %s11, 1
      %p204 = scmp.lt.s32.totalorder %s20, 1
      %s205 = scalar_select %p204, %s20, 1
      %p206 = scmp.lt.s32.totalorder %s21, 1
      %s207 = scalar_select %p206, %s21, 1
      %s208 = smul.addr %s205, 2
      %s209 = sadd.s32 %s207, %s208
      %s210 = smul.addr %s209, 4
      %s211 = scalar_lea.vmem %s0, %s210
      %p212 = pneg %p51
      %p213 = pneg %p48
      %p214 = scmp.lt.s32.totalorder %s20, 1
      %s215 = scalar_select %p214, %s20, 1
      %p216 = scmp.lt.s32.totalorder %s21, 1
      %s217 = scalar_select %p216, %s21, 1
      %s218 = smul.addr %s215, 2
      %s219 = sadd.s32 %s217, %s218
      %s220 = scalar_lea.vmem %s1, %s219
      %p221 = pneg %p79
      %p222 = pneg %p76
      %p223 = pneg %p105
      %p224 = pneg %p102
      %p225 = scmp.lt.s32.totalorder %s20, 1
      %s226 = scalar_select %p225, %s20, 1
      %s227 = smul.addr %s226, 4
      %s228 = scalar_lea.vmem %s2, %s227
      %p229 = pneg %p131
      %p230 = pneg %p128
      %p231 = scmp.lt.s32.totalorder %s20, 1
      %s232 = scalar_select %p231, %s20, 1
      %s233 = smul.addr %s232, 4
      %s234 = scalar_lea.vmem %s3, %s233
      %p235 = pneg %p157
      %p236 = pneg %p154
      %p237 = scmp.lt.s32.totalorder %s20, 1
      %s238 = scalar_select %p237, %s20, 1
      %s239 = smul.addr %s238, 4
      %s240 = scalar_lea.vmem %s4, %s239
      %p241 = scmp.lt.s32.totalorder %s20, 1
      %s242 = scalar_select %p241, %s20, 1
      %p243 = scmp.lt.s32.totalorder %s21, 1
      %s244 = scalar_select %p243, %s21, 1
      %s245 = smul.addr %s242, 2
      %s246 = sadd.s32 %s244, %s245
      %s247 = smul.addr %s246, 4
      %s248 = scalar_lea.vmem %s0, %s247
      %p249 = scmp.lt.s32.totalorder %s20, 1
      %s250 = scalar_select %p249, %s20, 1
      %p251 = scmp.lt.s32.totalorder %s21, 1
      %s252 = scalar_select %p251, %s21, 1
      %s253 = smul.addr %s250, 2
      %s254 = sadd.s32 %s252, %s253
      %s255 = scalar_lea.vmem %s1, %s254
      %p256 = scmp.lt.s32.totalorder %s20, 1
      %s257 = scalar_select %p256, %s20, 1
      %s258 = smul.addr %s257, 4
      %s259 = scalar_lea.vmem %s2, %s258
      %p260 = scmp.lt.s32.totalorder %s20, 1
      %s261 = scalar_select %p260, %s20, 1
      %s262 = smul.addr %s261, 4
      %s263 = scalar_lea.vmem %s3, %s262
      %p264 = scmp.lt.s32.totalorder %s20, 1
      %s265 = scalar_select %p264, %s20, 1
      %s266 = smul.addr %s265, 4
      %s267 = scalar_lea.vmem %s4, %s266
      %p268 = scmp.eq.s32.totalorder %s21, 0
      // Predicated region
      $region29: #{dice_loss.1} parent=27 // pred_check
        %p269 = pneg %p268
      $region30: #{dice_loss.1} parent=27 // pred_check_branch
        %271 = sbr.rel (%p269) target = $region32
      $region31: #{dice_loss.1} parent=27 // pred_region
        %vm272 = vcmask 3072
        %273 = vst.msk [vmem:[%s259] sm:$0xf] %vm272, 0.0
        %274 = vst.msk [vmem:[%s263] sm:$0xf] %vm272, 0.0
        %275 = vst.msk [vmem:[%s267] sm:$0xf] %vm272, 0.0
      $region32: #{dice_loss.1} parent=27 // pred_fallthru
        _
      %v276 = vld [vmem:[%s248] sm:$0xf]
      %v277 = vld [vmem:[%s255] sm:$0x1]
      %vm278 = vcmask 1043456
      %v279 = vsel %vm278, %v276, -inf
      %v280 = vrot.slane %v279, 4
      %v281 = vmax.f32 %v279, %v280
      %v282 = vrot.slane %v281, 2
      %v283 = vmax.f32 %v281, %v282
      %v284 = vrot.slane %v283, 1
      %v285 = vmax.f32 %v283, %v284
      %v286 = vsub.f32 %v276, %v285
      %v287 = vmul.f32 %v286, 1.442695
      %v288 = vpow.pop %v287
      %v289 = vsel %vm278, %v288, 0.0
      %v290 = vrot.slane %v289, 4
      %v291 = vadd.f32 %v289, %v290
      %v292 = vrot.slane %v291, 2
      %v293 = vadd.f32 %v291, %v292
      %v294 = vrot.slane %v293, 1
      %v295 = vadd.f32 %v293, %v294
      %v296 = vrcp.pop %v295
      %v297 = vmul.f32 %v288, %v296
      %v298 = vlaneseq
      %v299 = vshrl.u32 %v298, 7
      %v300 = vlaneseq
      %v301 = vshrl.u32 %v300, 7
      %v302 = vsub.s32 0, %v301
      %v303 = vrot.slane %v277, %v302
      %vm304 = vcmp.eq.s32.totalorder %v303, %v299
      %v305 = vld [vmem:[%s259] sm:$0xf]
      %v306 = vsel %vm304, %v297, 0.0
      %v307 = vsel %vm278, %v306, 0.0
      %308 = vadd.xlane.f32.xlu0 %v307
      %v309 = vpop.xlane.xlu0 %308
      %v310 = vadd.f32 %v305, %v309
      %vm311 = vcmask 3072
      %312 = vst.msk [vmem:[%s259] sm:$0xf] %vm311, %v310
      %v313 = vld [vmem:[%s263] sm:$0xf]
      %v314 = vmul.f32 %v297, %v297
      %v315 = vsel %vm278, %v314, 0.0
      %316 = vadd.xlane.f32.xlu0 %v315
      %v317 = vpop.xlane.xlu0 %316
      %v318 = vadd.f32 %v313, %v317
      %319 = vst.msk [vmem:[%s263] sm:$0xf] %vm311, %v318
      %v320 = vld [vmem:[%s267] sm:$0xf]
      %v321 = vsel %vm304, 1, 0
      %v322 = vcvt.s32.f32 %v321
      %v323 = vsel %vm278, %v322, 0.0
      %324 = vadd.xlane.f32.xlu0 %v323
      %v325 = vpop.xlane.xlu0 %324
      %v326 = vadd.f32 %v320, %v325
      %327 = vst.msk [vmem:[%s267] sm:$0xf] %vm311, %v326
      %p328 = scmp.lt.s32.totalorder %s20, 1
      %s329 = scalar_select %p328, %s20, 1
      %s330 = smul.addr %s329, 4
      %s331 = scalar_lea.vmem %s2, %s330
      %p332 = scmp.lt.s32.totalorder %s20, 1
      %s333 = scalar_select %p332, %s20, 1
      %s334 = smul.addr %s333, 4
      %s335 = scalar_lea.vmem %s3, %s334
      %p336 = scmp.lt.s32.totalorder %s20, 1
      %s337 = scalar_select %p336, %s20, 1
      %s338 = smul.addr %s337, 4
      %s339 = scalar_lea.vmem %s4, %s338
      // Predicated region
      $region33: #{dice_loss.1} parent=27 // pred_check
        %p340 = pneg %p102
      $region34: #{dice_loss.1} parent=27 // pred_check_branch
        %342 = sbr.rel (%p340) target = $region36
      $region35: #{dice_loss.1} parent=27 // pred_region
        _
      $region36: #{dice_loss.1} parent=27 // pred_fallthru
        _
      // Predicated region
      $region37: #{dice_loss.1} parent=27 // pred_check
        %p343 = pneg %p128
      $region38: #{dice_loss.1} parent=27 // pred_check_branch
        %345 = sbr.rel (%p343) target = $region40
      $region39: #{dice_loss.1} parent=27 // pred_region
        _
      $region40: #{dice_loss.1} parent=27 // pred_fallthru
        _
      // Predicated region
      $region41: #{dice_loss.1} parent=27 // pred_check
        %p346 = pneg %p154
      $region42: #{dice_loss.1} parent=27 // pred_check_branch
        %348 = sbr.rel (%p346) target = $region44
      $region43: #{dice_loss.1} parent=27 // pred_region
        _
      $region44: #{dice_loss.1} parent=27 // pred_fallthru
        _
    $region28: #{dice_loss.1} parent=5 // pred_fallthru
      _
    %p349 = scmp.le.s32.totalorder 2, %s11
    // Predicated region
    $region45: #{dice_loss.1} parent=5 // pred_check
      %p350 = pneg %p349
    $region46: #{dice_loss.1} parent=5 // pred_check_branch
      %352 = sbr.rel (%p350) target = $region48
    $region47: #{dice_loss.1} parent=5 // pred_region
      %s353 = ssub.s32 %s11, 2
      // Predicated region
      $region49: #{dice_loss.1} parent=47 // pred_check
        %p354 = pneg %p108
      $region50: #{dice_loss.1} parent=47 // pred_check_branch
        %356 = sbr.rel (%p354) target = $region52
      $region51: #{dice_loss.1} parent=47 // pred_region
        %p357 = scmp.lt.s32.totalorder %s22, 1
        %s358 = scalar_select %p357, %s22, 1
        %s359 = smul.addr %s358, 4
        %s360 = scalar_lea.vmem %s2, %s359
      $region52: #{dice_loss.1} parent=47 // pred_fallthru
        _
      // Predicated region
      $region53: #{dice_loss.1} parent=47 // pred_check
        %p361 = pneg %p134
      $region54: #{dice_loss.1} parent=47 // pred_check_branch
        %363 = sbr.rel (%p361) target = $region56
      $region55: #{dice_loss.1} parent=47 // pred_region
        %p364 = scmp.lt.s32.totalorder %s22, 1
        %s365 = scalar_select %p364, %s22, 1
        %s366 = smul.addr %s365, 4
        %s367 = scalar_lea.vmem %s3, %s366
      $region56: #{dice_loss.1} parent=47 // pred_fallthru
        _
      // Predicated region
      $region57: #{dice_loss.1} parent=47 // pred_check
        %p368 = pneg %p160
      $region58: #{dice_loss.1} parent=47 // pred_check_branch
        %370 = sbr.rel (%p368) target = $region60
      $region59: #{dice_loss.1} parent=47 // pred_region
        %p371 = scmp.lt.s32.totalorder %s22, 1
        %s372 = scalar_select %p371, %s22, 1
        %s373 = smul.addr %s372, 4
        %s374 = scalar_lea.vmem %s4, %s373
      $region60: #{dice_loss.1} parent=47 // pred_fallthru
        _
    $region48: #{dice_loss.1} parent=5 // pred_fallthru
      _
  $region6: #{dice_loss.1} parent=0 // loop_footer
    %s15 = sadd.s32 1, %s11
  $region7: #{dice_loss.1} parent=0 // loop_footer_branch
    %10 = sbr.rel target = $region3
  $region8: #{dice_loss.1} parent=0 // loop_exit
    _

</llo_original>
